<compile_context>
chip_gen: v7x
topology: tpu7x:2x2x1
jax: 0.10.0
libtpu: 0.0.40
codegen_flags: <defaults>
</compile_context>

<pallas_src>
import jax
import jax.numpy as jnp
from jax.experimental import pallas as pl
from jax.experimental.pallas import tpu as pltpu

HID = 64            # in_c1 of both decoders
BLOCK_M = 256       # default batch tile (sweepable)


# ----------------------------- in-kernel helpers -----------------------------

def _small_matmul(x, w):
    """(M, K) @ (K, N) for tiny K, unrolled as broadcasted outer-product sums
    (avoids tiny-contraction MXU shapes and lane concatenation)."""
    k = w.shape[0]
    acc = x[:, 0:1] * w[0:1, :]
    for j in range(1, k):
        acc = acc + x[:, j:j + 1] * w[j:j + 1, :]
    return acc


def _layer_norm(x, gamma, beta, eps=1e-5):
    mu = jnp.mean(x, axis=-1, keepdims=True)
    var = jnp.mean(jnp.square(x - mu), axis=-1, keepdims=True)
    return (x - mu) * jax.lax.rsqrt(var + eps) * gamma + beta


def _l2_normalize(x, eps=1e-12):
    # x / max(||x||, eps)  ==  x * rsqrt(max(||x||^2, eps^2))  (F.normalize)
    sq = jnp.sum(x * x, axis=-1, keepdims=True)
    return x * jax.lax.rsqrt(jnp.maximum(sq, eps * eps))


def _att_res_mlp_ln(x1, gate_pre, wa2_bf, ba2, w1_bf, b1, gamma, beta_ln,
                    w2_bf, b2):
    """Reconstructed att_res_mlp_LN body (relu_negative_slope = 0.0).
    MXU operands in bf16, accumulation + pointwise math in f32."""
    a = jnp.maximum(gate_pre, 0.0).astype(jnp.bfloat16)                  # ReLU
    gate = jax.nn.sigmoid(
        jnp.dot(a, wa2_bf, preferred_element_type=jnp.float32) + ba2)    # (M,64)
    h = x1 * gate                                                        # f32
    r = jnp.dot(h.astype(jnp.bfloat16), w1_bf,
                preferred_element_type=jnp.float32) + b1
    r = jnp.maximum(_layer_norm(r, gamma, beta_ln), 0.0) + h             # LN+ReLU+res
    return jnp.dot(r.astype(jnp.bfloat16), w2_bf,
                   preferred_element_type=jnp.float32) + b2              # (M,out_c)


# --------------------------------- the kernel --------------------------------

def gripper_kernel(cond_ref, rep_ref, wa1_ref, wbig_ref, w2_ref, vecs_ref,
                   out_ref):
    cond = cond_ref[...]          # (TM, 4): [approach(3), depth(1)]
    rep = rep_ref[...]            # (TM, 64) -- dropout(0.1) is identity here
    wa1 = wa1_ref[...]            # (10, 64) f32: beta[app,dep] | dist[app,dep,beta]
    vecs = vecs_ref[...]          # (12, 64) f32, 6 rows per decoder:
                                  #   [ba1, ba2, b1, ln_gamma, ln_beta, b2(pad)]
    w2 = w2_ref[...]              # (64, 4) bf16: cols [beta.W2(2) | dist.W2(2)]

    bwa2 = wbig_ref[0 * HID:1 * HID, :]   # (64,64) bf16
    bw1 = wbig_ref[1 * HID:2 * HID, :]
    dwa2 = wbig_ref[2 * HID:3 * HID, :]
    dw1 = wbig_ref[3 * HID:4 * HID, :]

    # ---------------- beta decoder: cond = cat([approach, depth]) (4) --------
    gate_pre_b = _small_matmul(cond, wa1[0:4, :]) + vecs[0:1, :]
    beta = _att_res_mlp_ln(rep, gate_pre_b,
                           bwa2, vecs[1:2, :],
                           bw1, vecs[2:3, :],
                           vecs[3:4, :], vecs[4:5, :],
                           w2[:, 0:2], vecs[5:6, 0:2])                   # (TM, 2)

    # ------------- dist/width decoder: cond = cat([app, beta, depth]) (6) ----
    # Wa1 rows were host-permuted: [app(3), dep(1)] first, beta(2) last.
    gate_pre_d = (_small_matmul(cond, wa1[4:8, :])
                  + _small_matmul(beta, wa1[8:10, :])
                  + vecs[6:7, :])
    dist_width = _att_res_mlp_ln(rep, gate_pre_d,
                                 dwa2, vecs[7:8, :],
                                 dw1, vecs[8:9, :],
                                 vecs[9:10, :], vecs[10:11, :],
                                 w2[:, 2:4], vecs[11:12, 0:2])           # (TM, 2)

    # -------- GripperGraspRegressor2 (sigmoid=True, the forward default) -----
    app = cond[:, 0:3]
    out_ref[...] = jnp.concatenate(
        [_l2_normalize(app), _l2_normalize(beta), jax.nn.sigmoid(dist_width)],
        axis=-1)                                                         # single store


# ------------------------------ param packing --------------------------------

def pack_params(p):
    """One-time host-side transform: consolidate 20 natural tensors into 4
    kernel operands (and cast the MXU weights to bf16)."""
    wa1 = jnp.concatenate(
        [p["b.wa1"],                         # beta decoder: [app(3), dep(1)]
         p["d.wa1"][0:3], p["d.wa1"][5:6],   # dist decoder: app(3), dep(1)
         p["d.wa1"][3:5]],                   # dist decoder: beta(2)
        axis=0).astype(jnp.float32)                                    # (10, 64)

    wbig = jnp.concatenate(
        [p["b.wa2"], p["b.w1"], p["d.wa2"], p["d.w1"]],
        axis=0).astype(jnp.bfloat16)                                   # (256, 64)

    w2 = jnp.concatenate([p["b.w2"], p["d.w2"]],
                         axis=1).astype(jnp.bfloat16)                  # (64, 4)

    def vecs(pref):
        rows = [p[pref + "ba1"], p[pref + "ba2"], p[pref + "b1"],
                p[pref + "gamma"], p[pref + "beta"],
                jnp.pad(p[pref + "b2"], (0, HID - p[pref + "b2"].shape[0]))]
        return jnp.stack(rows, axis=0)

    vecs_all = jnp.concatenate([vecs("b."), vecs("d.")],
                               axis=0).astype(jnp.float32)             # (12, 64)

    return {"Wa1": wa1, "Wbig": wbig, "W2": w2, "vecs": vecs_all}


# --------------------------------- wrapper -----------------------------------

def _round_up(x, m):
    return ((x + m - 1) // m) * m


def gripper_grasp_sampler(representation_2d, depth, latent_vector,
                          approach_seed, packed, *, block_m=BLOCK_M):
    """Forward pass.  `latent_vector` is accepted for signature parity with the
    reference module but (like the reference forward) is unused."""
    del latent_vector
    b = representation_2d.shape[0]

    # Tile choice: as large as requested, but keep >= 2 grid steps when the
    # batch allows it so both v7x TensorCores can get work.
    bm = min(block_m, max(8, _round_up(pl.cdiv(b, 2), 8)))
    b_pad = _round_up(b, bm)

    rep = representation_2d.astype(jnp.float32)
    cond = jnp.concatenate([approach_seed.astype(jnp.float32),
                            depth.astype(jnp.float32)], axis=1)        # (B, 4)
    if b_pad != b:
        rep = jnp.pad(rep, ((0, b_pad - b), (0, 0)))
        cond = jnp.pad(cond, ((0, b_pad - b), (0, 0)))

    grid = (b_pad // bm,)

    def row_spec(c):
        return pl.BlockSpec((bm, c), lambda i: (i, 0))

    def full_spec(shape):
        return pl.BlockSpec(shape, lambda i: (0,) * len(shape))

    out = pl.pallas_call(
        gripper_kernel,
        out_shape=jax.ShapeDtypeStruct((b_pad, 7), jnp.float32),
        grid=grid,
        in_specs=[row_spec(4), row_spec(HID),
                  full_spec(packed["Wa1"].shape),
                  full_spec(packed["Wbig"].shape),
                  full_spec(packed["W2"].shape),
                  full_spec(packed["vecs"].shape)],
        out_specs=row_spec(7),
        compiler_params=pltpu.CompilerParams(
            dimension_semantics=("parallel",)),
    )(cond, rep, packed["Wa1"], packed["Wbig"], packed["W2"], packed["vecs"])

    return out[:b]


# ---------------------------- deterministic params ---------------------------

def init_params(key):
    ks = jax.random.split(key, 16)

    def w(k, shape, scale=0.05):
        return (scale * jax.random.normal(k, shape)).astype(jnp.float32)

    def decoder(pref, in_c2, keys):
        return {
            pref + "wa1": w(keys[0], (in_c2, HID)),
            pref + "ba1": w(keys[1], (HID,), 0.01),
            pref + "wa2": w(keys[2], (HID, HID)),
            pref + "ba2": w(keys[3], (HID,), 0.01),
            pref + "w1":  w(keys[4], (HID, HID)),
            pref + "b1":  w(keys[5], (HID,), 0.01),
            pref + "gamma": jnp.ones((HID,), jnp.float32),
            pref + "beta":  jnp.zeros((HID,), jnp.float32),
            pref + "w2":  w(keys[6], (HID, 2)),
            pref + "b2":  w(keys[7], (2,), 0.01),
        }

    params = {}
    params.update(decoder("b.", 3 + 1, ks[0:8]))   # beta decoder (in_c2 = 4)
    params.update(decoder("d.", 5 + 1, ks[8:16]))  # dist/width decoder (in_c2 = 6)
    return params


# ----------------------------------- main -------------------------------------

if __name__ == "__main__":
    key = jax.random.PRNGKey(0)
    k_rep, k_dep, k_lat, k_app, k_par = jax.random.split(key, 5)

    B = 16
    representation_2d = jax.random.normal(k_rep, (B, HID), jnp.float32)
    depth = jax.random.normal(k_dep, (B, 1), jnp.float32)
    latent_vector = jax.random.normal(k_lat, (B, 8), jnp.float32)   # unused by forward
    approach_seed = jax.random.normal(k_app, (B, 3), jnp.float32)

    params = init_params(k_par)
    packed = pack_params(params)          # one-time host-side packing

    pose = gripper_grasp_sampler(representation_2d, depth, latent_vector,
                                 approach_seed, packed)
    pose = jax.block_until_ready(pose)

    assert pose.shape == (B, 7) and pose.dtype == jnp.float32
    assert bool(jnp.all(jnp.isfinite(pose)))
    print("KERNEL_OK")
</pallas_src>

<mosaic_0001>
module attributes {stable_mosaic.version = 11 : i64} {
  func.func @gripper_kernel(%arg0: i32, %arg1: memref<8x4xf32, #tpu.memory_space<vmem>>, %arg2: memref<8x64xf32, #tpu.memory_space<vmem>>, %arg3: memref<10x64xf32, #tpu.memory_space<vmem>>, %arg4: memref<256x64xbf16, #tpu.memory_space<vmem>>, %arg5: memref<64x4xbf16, #tpu.memory_space<vmem>>, %arg6: memref<12x64xf32, #tpu.memory_space<vmem>>, %arg7: memref<8x7xf32, #tpu.memory_space<vmem>>) attributes {dimension_semantics = [#tpu.dimension_semantics<parallel>], iteration_bounds = array<i64: 2>, scalar_prefetch = 0 : i64, scratch_operands = 0 : i64, tpu.core_type = #tpu.core_type<tc>, window_params = [{transform_indices = @transform_0, window_bounds = array<i64: 8, 4>}, {transform_indices = @transform_1, window_bounds = array<i64: 8, 64>}, {pipeline_mode = #tpu.pipeline_mode<synchronous>, transform_indices = @transform_2, window_bounds = array<i64: 10, 64>}, {pipeline_mode = #tpu.pipeline_mode<synchronous>, transform_indices = @transform_3, window_bounds = array<i64: 256, 64>}, {pipeline_mode = #tpu.pipeline_mode<synchronous>, transform_indices = @transform_4, window_bounds = array<i64: 64, 4>}, {pipeline_mode = #tpu.pipeline_mode<synchronous>, transform_indices = @transform_5, window_bounds = array<i64: 12, 64>}, {transform_indices = @transform_6, window_bounds = array<i64: 8, 7>}]} {
    %c0 = arith.constant 0 : index
    %c0_0 = arith.constant 0 : index
    %0 = vector.load %arg1[%c0, %c0_0] : memref<8x4xf32, #tpu.memory_space<vmem>>, vector<8x4xf32>
    %c0_1 = arith.constant 0 : index
    %c0_2 = arith.constant 0 : index
    %1 = vector.load %arg2[%c0_1, %c0_2] : memref<8x64xf32, #tpu.memory_space<vmem>>, vector<8x64xf32>
    %c0_3 = arith.constant 0 : index
    %c0_4 = arith.constant 0 : index
    %2 = vector.load %arg3[%c0_3, %c0_4] : memref<10x64xf32, #tpu.memory_space<vmem>>, vector<10x64xf32>
    %c0_5 = arith.constant 0 : index
    %c0_6 = arith.constant 0 : index
    %3 = vector.load %arg6[%c0_5, %c0_6] : memref<12x64xf32, #tpu.memory_space<vmem>>, vector<12x64xf32>
    %c0_7 = arith.constant 0 : index
    %c0_8 = arith.constant 0 : index
    %4 = vector.load %arg5[%c0_7, %c0_8] : memref<64x4xbf16, #tpu.memory_space<vmem>>, vector<64x4xbf16>
    %c0_9 = arith.constant 0 : index
    %c0_10 = arith.constant 0 : index
    %5 = vector.load %arg4[%c0_9, %c0_10] : memref<256x64xbf16, #tpu.memory_space<vmem>>, vector<64x64xbf16>
    %c64 = arith.constant 64 : index
    %c0_11 = arith.constant 0 : index
    %6 = vector.load %arg4[%c64, %c0_11] : memref<256x64xbf16, #tpu.memory_space<vmem>>, vector<64x64xbf16>
    %c128 = arith.constant 128 : index
    %c0_12 = arith.constant 0 : index
    %7 = vector.load %arg4[%c128, %c0_12] : memref<256x64xbf16, #tpu.memory_space<vmem>>, vector<64x64xbf16>
    %c192 = arith.constant 192 : index
    %c0_13 = arith.constant 0 : index
    %8 = vector.load %arg4[%c192, %c0_13] : memref<256x64xbf16, #tpu.memory_space<vmem>>, vector<64x64xbf16>
    %9 = vector.extract_strided_slice %2 {offsets = [0, 0], sizes = [4, 64], strides = [1, 1]} : vector<10x64xf32> to vector<4x64xf32>
    %10 = vector.extract_strided_slice %0 {offsets = [0, 0], sizes = [8, 1], strides = [1, 1]} : vector<8x4xf32> to vector<8x1xf32>
    %11 = vector.extract_strided_slice %9 {offsets = [0, 0], sizes = [1, 64], strides = [1, 1]} : vector<4x64xf32> to vector<1x64xf32>
    %12 = vector.broadcast %10 : vector<8x1xf32> to vector<8x64xf32>
    %13 = vector.broadcast %11 : vector<1x64xf32> to vector<8x64xf32>
    %14 = arith.mulf %12, %13 : vector<8x64xf32>
    %15 = vector.extract_strided_slice %0 {offsets = [0, 1], sizes = [8, 1], strides = [1, 1]} : vector<8x4xf32> to vector<8x1xf32>
    %16 = vector.extract_strided_slice %9 {offsets = [1, 0], sizes = [1, 64], strides = [1, 1]} : vector<4x64xf32> to vector<1x64xf32>
    %17 = vector.broadcast %15 : vector<8x1xf32> to vector<8x64xf32>
    %18 = vector.broadcast %16 : vector<1x64xf32> to vector<8x64xf32>
    %19 = arith.mulf %17, %18 : vector<8x64xf32>
    %20 = arith.addf %14, %19 : vector<8x64xf32>
    %21 = vector.extract_strided_slice %0 {offsets = [0, 2], sizes = [8, 1], strides = [1, 1]} : vector<8x4xf32> to vector<8x1xf32>
    %22 = vector.extract_strided_slice %9 {offsets = [2, 0], sizes = [1, 64], strides = [1, 1]} : vector<4x64xf32> to vector<1x64xf32>
    %23 = vector.broadcast %21 : vector<8x1xf32> to vector<8x64xf32>
    %24 = vector.broadcast %22 : vector<1x64xf32> to vector<8x64xf32>
    %25 = arith.mulf %23, %24 : vector<8x64xf32>
    %26 = arith.addf %20, %25 : vector<8x64xf32>
    %27 = vector.extract_strided_slice %0 {offsets = [0, 3], sizes = [8, 1], strides = [1, 1]} : vector<8x4xf32> to vector<8x1xf32>
    %28 = vector.extract_strided_slice %9 {offsets = [3, 0], sizes = [1, 64], strides = [1, 1]} : vector<4x64xf32> to vector<1x64xf32>
    %29 = vector.broadcast %27 : vector<8x1xf32> to vector<8x64xf32>
    %30 = vector.broadcast %28 : vector<1x64xf32> to vector<8x64xf32>
    %31 = arith.mulf %29, %30 : vector<8x64xf32>
    %32 = arith.addf %26, %31 : vector<8x64xf32>
    %33 = vector.extract_strided_slice %3 {offsets = [0, 0], sizes = [1, 64], strides = [1, 1]} : vector<12x64xf32> to vector<1x64xf32>
    %34 = vector.broadcast %33 : vector<1x64xf32> to vector<8x64xf32>
    %35 = arith.addf %32, %34 : vector<8x64xf32>
    %36 = vector.extract_strided_slice %3 {offsets = [1, 0], sizes = [1, 64], strides = [1, 1]} : vector<12x64xf32> to vector<1x64xf32>
    %37 = vector.extract_strided_slice %3 {offsets = [2, 0], sizes = [1, 64], strides = [1, 1]} : vector<12x64xf32> to vector<1x64xf32>
    %38 = vector.extract_strided_slice %3 {offsets = [3, 0], sizes = [1, 64], strides = [1, 1]} : vector<12x64xf32> to vector<1x64xf32>
    %39 = vector.extract_strided_slice %3 {offsets = [4, 0], sizes = [1, 64], strides = [1, 1]} : vector<12x64xf32> to vector<1x64xf32>
    %40 = vector.extract_strided_slice %4 {offsets = [0, 0], sizes = [64, 2], strides = [1, 1]} : vector<64x4xbf16> to vector<64x2xbf16>
    %41 = vector.extract_strided_slice %3 {offsets = [5, 0], sizes = [1, 2], strides = [1, 1]} : vector<12x64xf32> to vector<1x2xf32>
    %cst = arith.constant 0.000000e+00 : f32
    %42 = vector.broadcast %cst : f32 to vector<8x64xf32>
    %43 = arith.maximumf %35, %42 : vector<8x64xf32>
    %44 = arith.truncf %43 : vector<8x64xf32> to vector<8x64xbf16>
    %cst_14 = arith.constant dense<0.000000e+00> : vector<8x64xf32>
    %45 = tpu.matmul %44, %5, %cst_14 {dimension_numbers = #tpu.dot_dimension_numbers<[1], [0], [0], [1], [0, 0, 1, 1], [], []>} : vector<8x64xbf16>, vector<64x64xbf16>, vector<8x64xf32> -> vector<8x64xf32>
    %46 = vector.broadcast %36 : vector<1x64xf32> to vector<8x64xf32>
    %47 = arith.addf %45, %46 : vector<8x64xf32>
    %48 = arith.negf %47 : vector<8x64xf32>
    %49 = math.exp %48 : vector<8x64xf32>
    %cst_15 = arith.constant 1.000000e+00 : f32
    %50 = vector.broadcast %cst_15 : f32 to vector<8x64xf32>
    %51 = arith.addf %50, %49 : vector<8x64xf32>
    %52 = arith.divf %50, %51 : vector<8x64xf32>
    %53 = arith.mulf %1, %52 : vector<8x64xf32>
    %54 = arith.truncf %53 : vector<8x64xf32> to vector<8x64xbf16>
    %cst_16 = arith.constant dense<0.000000e+00> : vector<8x64xf32>
    %55 = tpu.matmul %54, %6, %cst_16 {dimension_numbers = #tpu.dot_dimension_numbers<[1], [0], [0], [1], [0, 0, 1, 1], [], []>} : vector<8x64xbf16>, vector<64x64xbf16>, vector<8x64xf32> -> vector<8x64xf32>
    %56 = vector.broadcast %37 : vector<1x64xf32> to vector<8x64xf32>
    %57 = arith.addf %55, %56 : vector<8x64xf32>
    %cst_17 = arith.constant dense<0.000000e+00> : vector<8xf32>
    %58 = vector.multi_reduction <add>, %57, %cst_17 [1] : vector<8x64xf32> to vector<8xf32>
    %59 = vector.shape_cast %58 : vector<8xf32> to vector<8x1xf32>
    %cst_18 = arith.constant 6.400000e+01 : f32
    %60 = vector.broadcast %cst_18 : f32 to vector<8x1xf32>
    %61 = arith.divf %59, %60 : vector<8x1xf32>
    %62 = vector.broadcast %61 : vector<8x1xf32> to vector<8x64xf32>
    %63 = arith.subf %57, %62 : vector<8x64xf32>
    %64 = arith.mulf %63, %63 : vector<8x64xf32>
    %cst_19 = arith.constant dense<0.000000e+00> : vector<8xf32>
    %65 = vector.multi_reduction <add>, %64, %cst_19 [1] : vector<8x64xf32> to vector<8xf32>
    %66 = vector.shape_cast %65 : vector<8xf32> to vector<8x1xf32>
    %cst_20 = arith.constant 6.400000e+01 : f32
    %67 = vector.broadcast %cst_20 : f32 to vector<8x1xf32>
    %68 = arith.divf %66, %67 : vector<8x1xf32>
    %69 = vector.broadcast %61 : vector<8x1xf32> to vector<8x64xf32>
    %70 = arith.subf %57, %69 : vector<8x64xf32>
    %cst_21 = arith.constant 9.99999974E-6 : f32
    %71 = vector.broadcast %cst_21 : f32 to vector<8x1xf32>
    %72 = arith.addf %68, %71 : vector<8x1xf32>
    %73 = math.rsqrt %72 : vector<8x1xf32>
    %74 = vector.broadcast %73 : vector<8x1xf32> to vector<8x64xf32>
    %75 = arith.mulf %70, %74 : vector<8x64xf32>
    %76 = vector.broadcast %38 : vector<1x64xf32> to vector<8x64xf32>
    %77 = arith.mulf %75, %76 : vector<8x64xf32>
    %78 = vector.broadcast %39 : vector<1x64xf32> to vector<8x64xf32>
    %79 = arith.addf %77, %78 : vector<8x64xf32>
    %cst_22 = arith.constant 0.000000e+00 : f32
    %80 = vector.broadcast %cst_22 : f32 to vector<8x64xf32>
    %81 = arith.maximumf %79, %80 : vector<8x64xf32>
    %82 = arith.addf %81, %53 : vector<8x64xf32>
    %83 = arith.truncf %82 : vector<8x64xf32> to vector<8x64xbf16>
    %cst_23 = arith.constant dense<0.000000e+00> : vector<8x2xf32>
    %84 = tpu.matmul %83, %40, %cst_23 {dimension_numbers = #tpu.dot_dimension_numbers<[1], [0], [0], [1], [0, 0, 1, 1], [], []>} : vector<8x64xbf16>, vector<64x2xbf16>, vector<8x2xf32> -> vector<8x2xf32>
    %85 = vector.broadcast %41 : vector<1x2xf32> to vector<8x2xf32>
    %86 = arith.addf %84, %85 : vector<8x2xf32>
    %87 = vector.extract_strided_slice %2 {offsets = [4, 0], sizes = [4, 64], strides = [1, 1]} : vector<10x64xf32> to vector<4x64xf32>
    %88 = vector.extract_strided_slice %0 {offsets = [0, 0], sizes = [8, 1], strides = [1, 1]} : vector<8x4xf32> to vector<8x1xf32>
    %89 = vector.extract_strided_slice %87 {offsets = [0, 0], sizes = [1, 64], strides = [1, 1]} : vector<4x64xf32> to vector<1x64xf32>
    %90 = vector.broadcast %88 : vector<8x1xf32> to vector<8x64xf32>
    %91 = vector.broadcast %89 : vector<1x64xf32> to vector<8x64xf32>
    %92 = arith.mulf %90, %91 : vector<8x64xf32>
    %93 = vector.extract_strided_slice %0 {offsets = [0, 1], sizes = [8, 1], strides = [1, 1]} : vector<8x4xf32> to vector<8x1xf32>
    %94 = vector.extract_strided_slice %87 {offsets = [1, 0], sizes = [1, 64], strides = [1, 1]} : vector<4x64xf32> to vector<1x64xf32>
    %95 = vector.broadcast %93 : vector<8x1xf32> to vector<8x64xf32>
    %96 = vector.broadcast %94 : vector<1x64xf32> to vector<8x64xf32>
    %97 = arith.mulf %95, %96 : vector<8x64xf32>
    %98 = arith.addf %92, %97 : vector<8x64xf32>
    %99 = vector.extract_strided_slice %0 {offsets = [0, 2], sizes = [8, 1], strides = [1, 1]} : vector<8x4xf32> to vector<8x1xf32>
    %100 = vector.extract_strided_slice %87 {offsets = [2, 0], sizes = [1, 64], strides = [1, 1]} : vector<4x64xf32> to vector<1x64xf32>
    %101 = vector.broadcast %99 : vector<8x1xf32> to vector<8x64xf32>
    %102 = vector.broadcast %100 : vector<1x64xf32> to vector<8x64xf32>
    %103 = arith.mulf %101, %102 : vector<8x64xf32>
    %104 = arith.addf %98, %103 : vector<8x64xf32>
    %105 = vector.extract_strided_slice %0 {offsets = [0, 3], sizes = [8, 1], strides = [1, 1]} : vector<8x4xf32> to vector<8x1xf32>
    %106 = vector.extract_strided_slice %87 {offsets = [3, 0], sizes = [1, 64], strides = [1, 1]} : vector<4x64xf32> to vector<1x64xf32>
    %107 = vector.broadcast %105 : vector<8x1xf32> to vector<8x64xf32>
    %108 = vector.broadcast %106 : vector<1x64xf32> to vector<8x64xf32>
    %109 = arith.mulf %107, %108 : vector<8x64xf32>
    %110 = arith.addf %104, %109 : vector<8x64xf32>
    %111 = vector.extract_strided_slice %2 {offsets = [8, 0], sizes = [2, 64], strides = [1, 1]} : vector<10x64xf32> to vector<2x64xf32>
    %112 = vector.extract_strided_slice %86 {offsets = [0, 0], sizes = [8, 1], strides = [1, 1]} : vector<8x2xf32> to vector<8x1xf32>
    %113 = vector.extract_strided_slice %111 {offsets = [0, 0], sizes = [1, 64], strides = [1, 1]} : vector<2x64xf32> to vector<1x64xf32>
    %114 = vector.broadcast %112 : vector<8x1xf32> to vector<8x64xf32>
    %115 = vector.broadcast %113 : vector<1x64xf32> to vector<8x64xf32>
    %116 = arith.mulf %114, %115 : vector<8x64xf32>
    %117 = vector.extract_strided_slice %86 {offsets = [0, 1], sizes = [8, 1], strides = [1, 1]} : vector<8x2xf32> to vector<8x1xf32>
    %118 = vector.extract_strided_slice %111 {offsets = [1, 0], sizes = [1, 64], strides = [1, 1]} : vector<2x64xf32> to vector<1x64xf32>
    %119 = vector.broadcast %117 : vector<8x1xf32> to vector<8x64xf32>
    %120 = vector.broadcast %118 : vector<1x64xf32> to vector<8x64xf32>
    %121 = arith.mulf %119, %120 : vector<8x64xf32>
    %122 = arith.addf %116, %121 : vector<8x64xf32>
    %123 = arith.addf %110, %122 : vector<8x64xf32>
    %124 = vector.extract_strided_slice %3 {offsets = [6, 0], sizes = [1, 64], strides = [1, 1]} : vector<12x64xf32> to vector<1x64xf32>
    %125 = vector.broadcast %124 : vector<1x64xf32> to vector<8x64xf32>
    %126 = arith.addf %123, %125 : vector<8x64xf32>
    %127 = vector.extract_strided_slice %3 {offsets = [7, 0], sizes = [1, 64], strides = [1, 1]} : vector<12x64xf32> to vector<1x64xf32>
    %128 = vector.extract_strided_slice %3 {offsets = [8, 0], sizes = [1, 64], strides = [1, 1]} : vector<12x64xf32> to vector<1x64xf32>
    %129 = vector.extract_strided_slice %3 {offsets = [9, 0], sizes = [1, 64], strides = [1, 1]} : vector<12x64xf32> to vector<1x64xf32>
    %130 = vector.extract_strided_slice %3 {offsets = [10, 0], sizes = [1, 64], strides = [1, 1]} : vector<12x64xf32> to vector<1x64xf32>
    %131 = vector.extract_strided_slice %4 {offsets = [0, 2], sizes = [64, 2], strides = [1, 1]} : vector<64x4xbf16> to vector<64x2xbf16>
    %132 = vector.extract_strided_slice %3 {offsets = [11, 0], sizes = [1, 2], strides = [1, 1]} : vector<12x64xf32> to vector<1x2xf32>
    %cst_24 = arith.constant 0.000000e+00 : f32
    %133 = vector.broadcast %cst_24 : f32 to vector<8x64xf32>
    %134 = arith.maximumf %126, %133 : vector<8x64xf32>
    %135 = arith.truncf %134 : vector<8x64xf32> to vector<8x64xbf16>
    %cst_25 = arith.constant dense<0.000000e+00> : vector<8x64xf32>
    %136 = tpu.matmul %135, %7, %cst_25 {dimension_numbers = #tpu.dot_dimension_numbers<[1], [0], [0], [1], [0, 0, 1, 1], [], []>} : vector<8x64xbf16>, vector<64x64xbf16>, vector<8x64xf32> -> vector<8x64xf32>
    %137 = vector.broadcast %127 : vector<1x64xf32> to vector<8x64xf32>
    %138 = arith.addf %136, %137 : vector<8x64xf32>
    %139 = arith.negf %138 : vector<8x64xf32>
    %140 = math.exp %139 : vector<8x64xf32>
    %cst_26 = arith.constant 1.000000e+00 : f32
    %141 = vector.broadcast %cst_26 : f32 to vector<8x64xf32>
    %142 = arith.addf %141, %140 : vector<8x64xf32>
    %143 = arith.divf %141, %142 : vector<8x64xf32>
    %144 = arith.mulf %1, %143 : vector<8x64xf32>
    %145 = arith.truncf %144 : vector<8x64xf32> to vector<8x64xbf16>
    %cst_27 = arith.constant dense<0.000000e+00> : vector<8x64xf32>
    %146 = tpu.matmul %145, %8, %cst_27 {dimension_numbers = #tpu.dot_dimension_numbers<[1], [0], [0], [1], [0, 0, 1, 1], [], []>} : vector<8x64xbf16>, vector<64x64xbf16>, vector<8x64xf32> -> vector<8x64xf32>
    %147 = vector.broadcast %128 : vector<1x64xf32> to vector<8x64xf32>
    %148 = arith.addf %146, %147 : vector<8x64xf32>
    %cst_28 = arith.constant dense<0.000000e+00> : vector<8xf32>
    %149 = vector.multi_reduction <add>, %148, %cst_28 [1] : vector<8x64xf32> to vector<8xf32>
    %150 = vector.shape_cast %149 : vector<8xf32> to vector<8x1xf32>
    %cst_29 = arith.constant 6.400000e+01 : f32
    %151 = vector.broadcast %cst_29 : f32 to vector<8x1xf32>
    %152 = arith.divf %150, %151 : vector<8x1xf32>
    %153 = vector.broadcast %152 : vector<8x1xf32> to vector<8x64xf32>
    %154 = arith.subf %148, %153 : vector<8x64xf32>
    %155 = arith.mulf %154, %154 : vector<8x64xf32>
    %cst_30 = arith.constant dense<0.000000e+00> : vector<8xf32>
    %156 = vector.multi_reduction <add>, %155, %cst_30 [1] : vector<8x64xf32> to vector<8xf32>
    %157 = vector.shape_cast %156 : vector<8xf32> to vector<8x1xf32>
    %cst_31 = arith.constant 6.400000e+01 : f32
    %158 = vector.broadcast %cst_31 : f32 to vector<8x1xf32>
    %159 = arith.divf %157, %158 : vector<8x1xf32>
    %160 = vector.broadcast %152 : vector<8x1xf32> to vector<8x64xf32>
    %161 = arith.subf %148, %160 : vector<8x64xf32>
    %cst_32 = arith.constant 9.99999974E-6 : f32
    %162 = vector.broadcast %cst_32 : f32 to vector<8x1xf32>
    %163 = arith.addf %159, %162 : vector<8x1xf32>
    %164 = math.rsqrt %163 : vector<8x1xf32>
    %165 = vector.broadcast %164 : vector<8x1xf32> to vector<8x64xf32>
    %166 = arith.mulf %161, %165 : vector<8x64xf32>
    %167 = vector.broadcast %129 : vector<1x64xf32> to vector<8x64xf32>
    %168 = arith.mulf %166, %167 : vector<8x64xf32>
    %169 = vector.broadcast %130 : vector<1x64xf32> to vector<8x64xf32>
    %170 = arith.addf %168, %169 : vector<8x64xf32>
    %cst_33 = arith.constant 0.000000e+00 : f32
    %171 = vector.broadcast %cst_33 : f32 to vector<8x64xf32>
    %172 = arith.maximumf %170, %171 : vector<8x64xf32>
    %173 = arith.addf %172, %144 : vector<8x64xf32>
    %174 = arith.truncf %173 : vector<8x64xf32> to vector<8x64xbf16>
    %cst_34 = arith.constant dense<0.000000e+00> : vector<8x2xf32>
    %175 = tpu.matmul %174, %131, %cst_34 {dimension_numbers = #tpu.dot_dimension_numbers<[1], [0], [0], [1], [0, 0, 1, 1], [], []>} : vector<8x64xbf16>, vector<64x2xbf16>, vector<8x2xf32> -> vector<8x2xf32>
    %176 = vector.broadcast %132 : vector<1x2xf32> to vector<8x2xf32>
    %177 = arith.addf %175, %176 : vector<8x2xf32>
    %178 = vector.extract_strided_slice %0 {offsets = [0, 0], sizes = [8, 3], strides = [1, 1]} : vector<8x4xf32> to vector<8x3xf32>
    %179 = arith.mulf %178, %178 : vector<8x3xf32>
    %cst_35 = arith.constant dense<0.000000e+00> : vector<8xf32>
    %180 = vector.multi_reduction <add>, %179, %cst_35 [1] : vector<8x3xf32> to vector<8xf32>
    %181 = vector.shape_cast %180 : vector<8xf32> to vector<8x1xf32>
    %cst_36 = arith.constant 1.000000e-24 : f32
    %182 = vector.broadcast %cst_36 : f32 to vector<8x1xf32>
    %183 = arith.maximumf %181, %182 : vector<8x1xf32>
    %184 = math.rsqrt %183 : vector<8x1xf32>
    %185 = vector.broadcast %184 : vector<8x1xf32> to vector<8x3xf32>
    %186 = arith.mulf %178, %185 : vector<8x3xf32>
    %187 = arith.mulf %86, %86 : vector<8x2xf32>
    %cst_37 = arith.constant dense<0.000000e+00> : vector<8xf32>
    %188 = vector.multi_reduction <add>, %187, %cst_37 [1] : vector<8x2xf32> to vector<8xf32>
    %189 = vector.shape_cast %188 : vector<8xf32> to vector<8x1xf32>
    %cst_38 = arith.constant 1.000000e-24 : f32
    %190 = vector.broadcast %cst_38 : f32 to vector<8x1xf32>
    %191 = arith.maximumf %189, %190 : vector<8x1xf32>
    %192 = math.rsqrt %191 : vector<8x1xf32>
    %193 = vector.broadcast %192 : vector<8x1xf32> to vector<8x2xf32>
    %194 = arith.mulf %86, %193 : vector<8x2xf32>
    %195 = arith.negf %177 : vector<8x2xf32>
    %196 = math.exp %195 : vector<8x2xf32>
    %cst_39 = arith.constant 1.000000e+00 : f32
    %197 = vector.broadcast %cst_39 : f32 to vector<8x2xf32>
    %198 = arith.addf %197, %196 : vector<8x2xf32>
    %199 = arith.divf %197, %198 : vector<8x2xf32>
    %200 = tpu.concatenate %186, %194, %199 in 1 : vector<8x3xf32>, vector<8x2xf32>, vector<8x2xf32> -> vector<8x7xf32>
    %c0_40 = arith.constant 0 : index
    %c0_41 = arith.constant 0 : index
    %201 = vector.load %arg7[%c0_40, %c0_41] : memref<8x7xf32, #tpu.memory_space<vmem>>, vector<8x7xf32>
    tpu.vector_store %arg7[%c0_40, %c0_41], %200 {strides = array<i32>} : memref<8x7xf32, #tpu.memory_space<vmem>>, vector<8x7xf32>,
    return
  }
  func.func @transform_0(%arg0: i32) -> (i32, i32) {
    %c0_i32 = arith.constant 0 : i32
    %c0_i32_0 = arith.constant 0 : i32
    return %arg0, %c0_i32 : i32, i32
  }
  func.func @transform_1(%arg0: i32) -> (i32, i32) {
    %c0_i32 = arith.constant 0 : i32
    %c0_i32_0 = arith.constant 0 : i32
    return %arg0, %c0_i32 : i32, i32
  }
  func.func @transform_2(%arg0: i32) -> (i32, i32) {
    %c0_i32 = arith.constant 0 : i32
    %c0_i32_0 = arith.constant 0 : i32
    %c0_i32_1 = arith.constant 0 : i32
    return %c0_i32, %c0_i32_0 : i32, i32
  }
  func.func @transform_3(%arg0: i32) -> (i32, i32) {
    %c0_i32 = arith.constant 0 : i32
    %c0_i32_0 = arith.constant 0 : i32
    %c0_i32_1 = arith.constant 0 : i32
    return %c0_i32, %c0_i32_0 : i32, i32
  }
  func.func @transform_4(%arg0: i32) -> (i32, i32) {
    %c0_i32 = arith.constant 0 : i32
    %c0_i32_0 = arith.constant 0 : i32
    %c0_i32_1 = arith.constant 0 : i32
    return %c0_i32, %c0_i32_0 : i32, i32
  }
  func.func @transform_5(%arg0: i32) -> (i32, i32) {
    %c0_i32 = arith.constant 0 : i32
    %c0_i32_0 = arith.constant 0 : i32
    %c0_i32_1 = arith.constant 0 : i32
    return %c0_i32, %c0_i32_0 : i32, i32
  }
  func.func @transform_6(%arg0: i32) -> (i32, i32) {
    %c0_i32 = arith.constant 0 : i32
    %c0_i32_0 = arith.constant 0 : i32
    return %arg0, %c0_i32 : i32, i32
  }
}

</mosaic_0001>

<llo_original>
// kernel: tpu_custom_call.1
$region0: #{tpu_custom_call.1}
  #allocation0 [shape = 'u32[]', space=smem, size = 0x4, offset = 0x4, fixed_abs, tag = 'smem constant byte address 0x4 - core index']
  #allocation1 [shape = 'u32[144,128]{1,0:T(1,128)}', space=vmem, size = 0x12000, scoped, tag = 'internal scratch']
  %s0 = inlined_call_operand.vmem [shape: f32[16,4], index: 0, kind: input, shape index: {}]
  %s1 = inlined_call_operand.vmem [shape: f32[16,64], index: 1, kind: input, shape index: {}]
  %s2 = inlined_call_operand.vmem [shape: f32[10,64], index: 2, kind: input, shape index: {}]
  %s3 = inlined_call_operand.vmem [shape: bf16[256,64], index: 3, kind: input, shape index: {}]
  %s4 = inlined_call_operand.vmem [shape: bf16[64,4], index: 4, kind: input, shape index: {}]
  %s5 = inlined_call_operand.vmem [shape: f32[12,64], index: 5, kind: input, shape index: {}]
  %s6 = inlined_call_operand.vmem [shape: f32[16,7], index: 6, kind: output, shape index: {}]
  %s7 = sld [smem:[#allocation0]]
  $region57: #{tpu_custom_call.1} parent=0
    _
  %s9 = ssub.s32 1, %s7
  %s10 = scalar_select 0, %s9, %s7
  loop: start=0, step=1, limit=4
  $region2: #{tpu_custom_call.1} parent=0 // loop_pre_header
    _
  $region3: #{tpu_custom_call.1} parent=0 // loop_header
    %s12 = sphi 0, %s16
    %p13 = scmp.ge.s32.totalorder %s12, 4
    %s22 = sphi 0, %s24
    %s25 = sphi 0, %s22
    %s26 = sphi 0, %s25
    %s42 = sphi 0, %s26
    %s48 = sphi 0, %s50
    %s51 = sphi 0, %s48
    %s52 = sphi 0, %s51
    %s68 = sphi 0, %s52
    %s72 = sphi 0, %s72
    %s74 = sphi 0, %s72
    %s75 = sphi 0, %s74
    %s89 = sphi 0, %s75
    %s93 = sphi 0, %s93
    %s95 = sphi 0, %s93
    %s96 = sphi 0, %s95
    %s110 = sphi 0, %s96
    %s114 = sphi 0, %s114
    %s116 = sphi 0, %s114
    %s117 = sphi 0, %s116
    %s131 = sphi 0, %s117
    %s135 = sphi 0, %s135
    %s137 = sphi 0, %s135
    %s138 = sphi 0, %s137
    %s152 = sphi 0, %s138
    %s158 = sphi 0, %s160
    %s161 = sphi 0, %s158
    %s162 = sphi 0, %s161
    %s178 = sphi 0, %s162
  $region4: #{tpu_custom_call.1} parent=0 // loop_header_branch
    %15 = sbr.rel (%p13) target = $region8
  $region5: #{tpu_custom_call.1} parent=0 // loop_body
    %s17 = ssub.s32 %s12, 1
    %s18 = ssub.s32 %s12, 2
    %s19 = sadd.s32 %s12, 1
    %s20 = ssub.s32 %s12, %s19
    %p21 = scmp.eq.s32.totalorder %s20, 0
    %s23 = sadd.s32 %s22, 1
    %s24 = scalar_select %p21, %s22, %s23
    %p27 = pneg %p21
    %p28 = scmp.eq.s32.totalorder %s12, 1
    %p29 = por %p27, %p28
    %p30 = scmp.ne.s32.totalorder %s22, %s25
    %p31 = scmp.eq.s32.totalorder %s12, 0
    %p32 = por %p30, %p31
    %p33 = scmp.ne.s32.totalorder %s22, %s25
    %p34 = scmp.eq.s32.totalorder %s17, 1
    %p35 = por %p33, %p34
    %p36 = scmp.ne.s32.totalorder %s25, %s26
    %p37 = scmp.eq.s32.totalorder %s17, 0
    %p38 = por %p36, %p37
    %p39 = scmp.ne.s32.totalorder %s25, %s26
    %p40 = scmp.eq.s32.totalorder %s18, 1
    %p41 = por %p39, %p40
    %p43 = scmp.ne.s32.totalorder %s26, %s42
    %p44 = scmp.eq.s32.totalorder %s18, 0
    %p45 = por %p43, %p44
    %s46 = ssub.s32 %s12, %s19
    %p47 = scmp.eq.s32.totalorder %s46, 0
    %s49 = sadd.s32 %s48, 1
    %s50 = scalar_select %p47, %s48, %s49
    %p53 = pneg %p47
    %p54 = scmp.eq.s32.totalorder %s12, 1
    %p55 = por %p53, %p54
    %p56 = scmp.ne.s32.totalorder %s48, %s51
    %p57 = scmp.eq.s32.totalorder %s12, 0
    %p58 = por %p56, %p57
    %p59 = scmp.ne.s32.totalorder %s48, %s51
    %p60 = scmp.eq.s32.totalorder %s17, 1
    %p61 = por %p59, %p60
    %p62 = scmp.ne.s32.totalorder %s51, %s52
    %p63 = scmp.eq.s32.totalorder %s17, 0
    %p64 = por %p62, %p63
    %p65 = scmp.ne.s32.totalorder %s51, %s52
    %p66 = scmp.eq.s32.totalorder %s18, 1
    %p67 = por %p65, %p66
    %p69 = scmp.ne.s32.totalorder %s52, %s68
    %p70 = scmp.eq.s32.totalorder %s18, 0
    %p71 = por %p69, %p70
    %s73 = sadd.s32 %s72, 1
    %p76 = scmp.eq.s32.totalorder %s12, 1
    %p77 = scmp.ne.s32.totalorder %s72, %s74
    %p78 = scmp.eq.s32.totalorder %s12, 0
    %p79 = por %p77, %p78
    %p80 = scmp.ne.s32.totalorder %s72, %s74
    %p81 = scmp.eq.s32.totalorder %s17, 1
    %p82 = por %p80, %p81
    %p83 = scmp.ne.s32.totalorder %s74, %s75
    %p84 = scmp.eq.s32.totalorder %s17, 0
    %p85 = por %p83, %p84
    %p86 = scmp.ne.s32.totalorder %s74, %s75
    %p87 = scmp.eq.s32.totalorder %s18, 1
    %p88 = por %p86, %p87
    %p90 = scmp.ne.s32.totalorder %s75, %s89
    %p91 = scmp.eq.s32.totalorder %s18, 0
    %p92 = por %p90, %p91
    %s94 = sadd.s32 %s93, 1
    %p97 = scmp.eq.s32.totalorder %s12, 1
    %p98 = scmp.ne.s32.totalorder %s93, %s95
    %p99 = scmp.eq.s32.totalorder %s12, 0
    %p100 = por %p98, %p99
    %p101 = scmp.ne.s32.totalorder %s93, %s95
    %p102 = scmp.eq.s32.totalorder %s17, 1
    %p103 = por %p101, %p102
    %p104 = scmp.ne.s32.totalorder %s95, %s96
    %p105 = scmp.eq.s32.totalorder %s17, 0
    %p106 = por %p104, %p105
    %p107 = scmp.ne.s32.totalorder %s95, %s96
    %p108 = scmp.eq.s32.totalorder %s18, 1
    %p109 = por %p107, %p108
    %p111 = scmp.ne.s32.totalorder %s96, %s110
    %p112 = scmp.eq.s32.totalorder %s18, 0
    %p113 = por %p111, %p112
    %s115 = sadd.s32 %s114, 1
    %p118 = scmp.eq.s32.totalorder %s12, 1
    %p119 = scmp.ne.s32.totalorder %s114, %s116
    %p120 = scmp.eq.s32.totalorder %s12, 0
    %p121 = por %p119, %p120
    %p122 = scmp.ne.s32.totalorder %s114, %s116
    %p123 = scmp.eq.s32.totalorder %s17, 1
    %p124 = por %p122, %p123
    %p125 = scmp.ne.s32.totalorder %s116, %s117
    %p126 = scmp.eq.s32.totalorder %s17, 0
    %p127 = por %p125, %p126
    %p128 = scmp.ne.s32.totalorder %s116, %s117
    %p129 = scmp.eq.s32.totalorder %s18, 1
    %p130 = por %p128, %p129
    %p132 = scmp.ne.s32.totalorder %s117, %s131
    %p133 = scmp.eq.s32.totalorder %s18, 0
    %p134 = por %p132, %p133
    %s136 = sadd.s32 %s135, 1
    %p139 = scmp.eq.s32.totalorder %s12, 1
    %p140 = scmp.ne.s32.totalorder %s135, %s137
    %p141 = scmp.eq.s32.totalorder %s12, 0
    %p142 = por %p140, %p141
    %p143 = scmp.ne.s32.totalorder %s135, %s137
    %p144 = scmp.eq.s32.totalorder %s17, 1
    %p145 = por %p143, %p144
    %p146 = scmp.ne.s32.totalorder %s137, %s138
    %p147 = scmp.eq.s32.totalorder %s17, 0
    %p148 = por %p146, %p147
    %p149 = scmp.ne.s32.totalorder %s137, %s138
    %p150 = scmp.eq.s32.totalorder %s18, 1
    %p151 = por %p149, %p150
    %p153 = scmp.ne.s32.totalorder %s138, %s152
    %p154 = scmp.eq.s32.totalorder %s18, 0
    %p155 = por %p153, %p154
    %s156 = ssub.s32 %s12, %s19
    %p157 = scmp.eq.s32.totalorder %s156, 0
    %s159 = sadd.s32 %s158, 1
    %s160 = scalar_select %p157, %s158, %s159
    %p163 = pneg %p157
    %p164 = scmp.eq.s32.totalorder %s12, 1
    %p165 = por %p163, %p164
    %p166 = scmp.ne.s32.totalorder %s158, %s161
    %p167 = scmp.eq.s32.totalorder %s12, 0
    %p168 = por %p166, %p167
    %p169 = scmp.ne.s32.totalorder %s158, %s161
    %p170 = scmp.eq.s32.totalorder %s17, 1
    %p171 = por %p169, %p170
    %p172 = scmp.ne.s32.totalorder %s161, %s162
    %p173 = scmp.eq.s32.totalorder %s17, 0
    %p174 = por %p172, %p173
    %p175 = scmp.ne.s32.totalorder %s161, %s162
    %p176 = scmp.eq.s32.totalorder %s18, 1
    %p177 = por %p175, %p176
    %p179 = scmp.ne.s32.totalorder %s162, %s178
    %p180 = scmp.eq.s32.totalorder %s18, 0
    %p181 = por %p179, %p180
    %p182 = scmp.le.s32.totalorder 1, %s12
    %p183 = scmp.lt.s32.totalorder %s12, 3
    %p184 = pnand %p182, %p183
    %p185 = pneg %p184
    // Predicated region
    $region9: #{tpu_custom_call.1} parent=5 // pred_check
      _
    $region10: #{tpu_custom_call.1} parent=5 // pred_check_branch
      %187 = sbr.rel (%p184) target = $region12
    $region11: #{tpu_custom_call.1} parent=5 // pred_region
      %s188 = ssub.s32 %s12, 1
      // Predicated region
      $region13: #{tpu_custom_call.1} parent=11 // pred_check
        %p189 = pneg %p85
      $region14: #{tpu_custom_call.1} parent=11 // pred_check_branch
        %191 = sbr.rel (%p189) target = $region16
      $region15: #{tpu_custom_call.1} parent=11 // pred_region
        _
      $region16: #{tpu_custom_call.1} parent=11 // pred_fallthru
        _
      // Predicated region
      $region17: #{tpu_custom_call.1} parent=11 // pred_check
        %p192 = pneg %p106
      $region18: #{tpu_custom_call.1} parent=11 // pred_check_branch
        %194 = sbr.rel (%p192) target = $region20
      $region19: #{tpu_custom_call.1} parent=11 // pred_region
        _
      $region20: #{tpu_custom_call.1} parent=11 // pred_fallthru
        _
      // Predicated region
      $region21: #{tpu_custom_call.1} parent=11 // pred_check
        %p195 = pneg %p127
      $region22: #{tpu_custom_call.1} parent=11 // pred_check_branch
        %197 = sbr.rel (%p195) target = $region24
      $region23: #{tpu_custom_call.1} parent=11 // pred_region
        _
      $region24: #{tpu_custom_call.1} parent=11 // pred_fallthru
        _
      // Predicated region
      $region25: #{tpu_custom_call.1} parent=11 // pred_check
        %p198 = pneg %p148
      $region26: #{tpu_custom_call.1} parent=11 // pred_check_branch
        %200 = sbr.rel (%p198) target = $region28
      $region27: #{tpu_custom_call.1} parent=11 // pred_region
        _
      $region28: #{tpu_custom_call.1} parent=11 // pred_fallthru
        _
    $region12: #{tpu_custom_call.1} parent=5 // pred_fallthru
      _
    %p201 = scmp.lt.s32.totalorder %s12, 2
    // Predicated region
    $region29: #{tpu_custom_call.1} parent=5 // pred_check
      %p202 = pneg %p201
    $region30: #{tpu_custom_call.1} parent=5 // pred_check_branch
      %204 = sbr.rel (%p202) target = $region32
    $region31: #{tpu_custom_call.1} parent=5 // pred_region
      // Predicated region
      $region33: #{tpu_custom_call.1} parent=31 // pred_check
        %p205 = pneg %p32
      $region34: #{tpu_custom_call.1} parent=31 // pred_check_branch
        %207 = sbr.rel (%p205) target = $region36
      $region35: #{tpu_custom_call.1} parent=31 // pred_region
        %p208 = scmp.lt.s32.totalorder %s12, 1
        %s209 = scalar_select %p208, %s12, 1
        %s210 = smul.addr %s209, 8
        %s211 = scalar_lea.vmem %s0, %s210
      $region36: #{tpu_custom_call.1} parent=31 // pred_fallthru
        _
      // Predicated region
      $region37: #{tpu_custom_call.1} parent=31 // pred_check
        %p212 = pneg %p58
      $region38: #{tpu_custom_call.1} parent=31 // pred_check_branch
        %214 = sbr.rel (%p212) target = $region40
      $region39: #{tpu_custom_call.1} parent=31 // pred_region
        %p215 = scmp.lt.s32.totalorder %s12, 1
        %s216 = scalar_select %p215, %s12, 1
        %s217 = smul.addr %s216, 8
        %s218 = scalar_lea.vmem %s1, %s217
      $region40: #{tpu_custom_call.1} parent=31 // pred_fallthru
        _
    $region32: #{tpu_custom_call.1} parent=5 // pred_fallthru
      _
    %p219 = scmp.le.s32.totalorder 1, %s12
    %p220 = scmp.lt.s32.totalorder %s12, 3
    %p221 = pnand %p219, %p220
    %p222 = pneg %p221
    // Predicated region
    $region41: #{tpu_custom_call.1} parent=5 // pred_check
      _
    $region42: #{tpu_custom_call.1} parent=5 // pred_check_branch
      %224 = sbr.rel (%p221) target = $region44
    $region43: #{tpu_custom_call.1} parent=5 // pred_region
      %s225 = ssub.s32 %s12, 1
      %p226 = scmp.lt.s32.totalorder %s17, 1
      %s227 = scalar_select %p226, %s17, 1
      %s228 = smul.addr %s227, 8
      %s229 = scalar_lea.vmem %s0, %s228
      %p230 = pneg %p38
      %p231 = pneg %p35
      %p232 = scmp.lt.s32.totalorder %s17, 1
      %s233 = scalar_select %p232, %s17, 1
      %s234 = smul.addr %s233, 8
      %s235 = scalar_lea.vmem %s1, %s234
      %p236 = pneg %p64
      %p237 = pneg %p61
      %p238 = pneg %p85
      %p239 = pneg %p82
      %p240 = pneg %p106
      %p241 = pneg %p103
      %p242 = pneg %p127
      %p243 = pneg %p124
      %p244 = pneg %p148
      %p245 = pneg %p145
      %p246 = pneg %p174
      %p247 = pneg %p171
      %p248 = scmp.lt.s32.totalorder %s17, 1
      %s249 = scalar_select %p248, %s17, 1
      %s250 = smul.addr %s249, 8
      %s251 = scalar_lea.vmem %s6, %s250
      %p252 = scmp.lt.s32.totalorder %s17, 1
      %s253 = scalar_select %p252, %s17, 1
      %s254 = smul.addr %s253, 8
      %s255 = scalar_lea.vmem %s0, %s254
      %p256 = scmp.lt.s32.totalorder %s17, 1
      %s257 = scalar_select %p256, %s17, 1
      %s258 = smul.addr %s257, 8
      %s259 = scalar_lea.vmem %s1, %s258
      %p260 = scmp.lt.s32.totalorder %s17, 1
      %s261 = scalar_select %p260, %s17, 1
      %s262 = smul.addr %s261, 8
      %s263 = scalar_lea.vmem %s6, %s262
      %v265 = vld [vmem:[%s255] sm:$0xff]
      %v266 = vld [vmem:[%s259] sm:$0xff]
      %v267 = vld [vmem:[%s2] sm:$0xff]
      %v268 = vld [vmem:[%s2 + $0x8] sm:$0x3]
      %v269 = vld [vmem:[%s5] sm:$0xff]
      %v270 = vld [vmem:[%s5 + $0x8] sm:$0xf]
      %v271 = vld [vmem:[%s4] sm:$0xf]
      %v272 = vld [vmem:[%s4 + $0x4] sm:$0xf]
      %v273 = vld [vmem:[%s4 + $0x8] sm:$0xf]
      %v274 = vld [vmem:[%s4 + $0xc] sm:$0xf]
      %v275 = vld [vmem:[%s4 + $0x10] sm:$0xf]
      %v276 = vld [vmem:[%s4 + $0x14] sm:$0xf]
      %v277 = vld [vmem:[%s4 + $0x18] sm:$0xf]
      %v278 = vld [vmem:[%s4 + $0x1c] sm:$0xf]
      %v279 = vld [vmem:[%s3] sm:$0xf]
      %v280 = vld [vmem:[%s3 + $0x4] sm:$0xf]
      %v281 = vld [vmem:[%s3 + $0x8] sm:$0xf]
      %v282 = vld [vmem:[%s3 + $0xc] sm:$0xf]
      %v283 = vld [vmem:[%s3 + $0x10] sm:$0xf]
      %v284 = vld [vmem:[%s3 + $0x14] sm:$0xf]
      %v285 = vld [vmem:[%s3 + $0x18] sm:$0xf]
      %v286 = vld [vmem:[%s3 + $0x1c] sm:$0xf]
      %v287 = vld [vmem:[%s3 + $0x20] sm:$0xf]
      %v288 = vld [vmem:[%s3 + $0x24] sm:$0xf]
      %v289 = vld [vmem:[%s3 + $0x28] sm:$0xf]
      %v290 = vld [vmem:[%s3 + $0x2c] sm:$0xf]
      %v291 = vld [vmem:[%s3 + $0x30] sm:$0xf]
      %v292 = vld [vmem:[%s3 + $0x34] sm:$0xf]
      %v293 = vld [vmem:[%s3 + $0x38] sm:$0xf]
      %v294 = vld [vmem:[%s3 + $0x3c] sm:$0xf]
      %v295 = vld [vmem:[%s3 + $0x40] sm:$0xf]
      %v296 = vld [vmem:[%s3 + $0x44] sm:$0xf]
      %v297 = vld [vmem:[%s3 + $0x48] sm:$0xf]
      %v298 = vld [vmem:[%s3 + $0x4c] sm:$0xf]
      %v299 = vld [vmem:[%s3 + $0x50] sm:$0xf]
      %v300 = vld [vmem:[%s3 + $0x54] sm:$0xf]
      %v301 = vld [vmem:[%s3 + $0x58] sm:$0xf]
      %v302 = vld [vmem:[%s3 + $0x5c] sm:$0xf]
      %v303 = vld [vmem:[%s3 + $0x60] sm:$0xf]
      %v304 = vld [vmem:[%s3 + $0x64] sm:$0xf]
      %v305 = vld [vmem:[%s3 + $0x68] sm:$0xf]
      %v306 = vld [vmem:[%s3 + $0x6c] sm:$0xf]
      %v307 = vld [vmem:[%s3 + $0x70] sm:$0xf]
      %v308 = vld [vmem:[%s3 + $0x74] sm:$0xf]
      %v309 = vld [vmem:[%s3 + $0x78] sm:$0xf]
      %v310 = vld [vmem:[%s3 + $0x7c] sm:$0xf]
      %312 = vset.pattern.permute.xlu0 0
      %313 = vperm.xlu0 %312, %v265
      %v314 = vpop.permute.xlu0 %313
      %v316 = vlaneseq
      %v317 = vshrl.u32 %v316, 7
      %v318 = vsub.s32 0, %v317
      %v319 = vrot.slane %v267, %v318
      %v320 = vmul.f32 %v314, %v319
      %321 = vset.pattern.permute.xlu0 1
      %322 = vperm.xlu0 %321, %v265
      %v323 = vpop.permute.xlu0 %322
      %v325 = vlaneseq
      %v326 = vshrl.u32 %v325, 7
      %v327 = vsub.s32 1, %v326
      %v328 = vrot.slane %v267, %v327
      %v329 = vmul.f32 %v323, %v328
      %v330 = vadd.f32 %v320, %v329
      %331 = vset.pattern.permute.xlu0 2
      %332 = vperm.xlu0 %331, %v265
      %v333 = vpop.permute.xlu0 %332
      %v335 = vlaneseq
      %v336 = vshrl.u32 %v335, 7
      %v337 = vsub.s32 2, %v336
      %v338 = vrot.slane %v267, %v337
      %v339 = vmul.f32 %v333, %v338
      %v340 = vadd.f32 %v330, %v339
      %341 = vset.pattern.permute.xlu0 3
      %342 = vperm.xlu0 %341, %v265
      %v343 = vpop.permute.xlu0 %342
      %v345 = vlaneseq
      %v346 = vshrl.u32 %v345, 7
      %v347 = vsub.s32 3, %v346
      %v348 = vrot.slane %v267, %v347
      %v349 = vmul.f32 %v343, %v348
      %v350 = vadd.f32 %v340, %v349
      %v351 = vlaneseq
      %v352 = vshrl.u32 %v351, 7
      %v353 = vsub.s32 0, %v352
      %v354 = vrot.slane %v269, %v353
      %v355 = vadd.f32 %v350, %v354
      %v356 = vmax.f32 %v355, 0.0
      %v357 = vpack.c.bf16 %v356, %v356
      %v358 = vlaneseq
      %v359 = vshrl.u32 %v358, 7
      %v360 = vsub.s32 1, %v359
      %v361 = vrot.slane %v269, %v360
      %v370 = vunpack.c.l.b16 %v279
      %v371 = vunpack.c.l.b16 %v280
      %v372 = vunpack.c.l.b16 %v281
      %v373 = vunpack.c.l.b16 %v282
      %v374 = vunpack.c.l.b16 %v283
      %v375 = vunpack.c.l.b16 %v284
      %v376 = vunpack.c.l.b16 %v285
      %v377 = vunpack.c.l.b16 %v286
      %v378 = vpack.c.b16 %v371, %v370
      %v379 = vpack.c.b16 %v373, %v372
      %v380 = vpack.c.b16 %v375, %v374
      %v381 = vpack.c.b16 %v377, %v376
      %vm386 = vcmask 523264
      %v388 = vsel %vm386, %v357, 0
      %390 = vmatprep.subr.bf16.mxu0 0
      %391 = vmatpush1.bf16.msra.mxu0 %v378
      %392 = vmatprep.subr.bf16.mxu0 0
      %393 = vmatpush1.bf16.msra.mxu0 %v379
      %394 = vmatprep.subr.bf16.mxu0 0
      %395 = vmatpush1.bf16.msra.mxu0 %v380
      %396 = vmatprep.subr.bf16.mxu0 0
      %397 = vmatpush1.bf16.msra.mxu0 %v381
      %398 = vmatprep.subr.bf16.mxu0 0
      %399 = vmatpush1.bf16.msra.mxu0 0
      %400 = vmatprep.subr.bf16.mxu0 0
      %401 = vmatpush1.bf16.msra.mxu0 0
      %402 = vmatprep.subr.bf16.mxu0 0
      %403 = vmatpush1.bf16.msra.mxu0 0
      %404 = vmatprep.subr.bf16.mxu0 0
      %405 = vmatpush1.bf16.msra.mxu0 0
      %406 = vmatprep.subr.bf16.mxu0 0
      %407 = vmatpush1.bf16.msra.mxu0 0
      %408 = vmatprep.subr.bf16.mxu0 0
      %409 = vmatpush1.bf16.msra.mxu0 0
      %410 = vmatprep.subr.bf16.mxu0 0
      %411 = vmatpush1.bf16.msra.mxu0 0
      %412 = vmatprep.subr.bf16.mxu0 0
      %413 = vmatpush1.bf16.msra.mxu0 0
      %414 = vmatprep.subr.bf16.mxu0 0
      %415 = vmatpush1.bf16.msra.mxu0 0
      %416 = vmatprep.subr.bf16.mxu0 0
      %417 = vmatpush1.bf16.msra.mxu0 0
      %418 = vmatprep.subr.bf16.mxu0 0
      %419 = vmatpush1.bf16.msra.mxu0 0
      %420 = vmatprep.subr.bf16.mxu0 0
      %421 = vmatpush1.bf16.msra.mxu0 0
      %422 = vmatprep.mubr.bf16.mxu0 0
      %423 = vmatmul.mubr.bf16.gmra.mrb[0].mxu0 %v388
      %v424 = vpop.f32.mrb[0].mxu0
      %v425 = vadd.f32 %v361, %v424
      %v426 = vpop.f32.mrb[0].mxu0
      %v427 = vpop.f32.mrb[0].mxu0
      %v428 = vpop.f32.mrb[0].mxu0
      %429 = vdwg.mxu0
      %v430 = vxor.u32 %v425, 2147483648
      %v431 = vmul.f32 %v430, 1.442695
      %v432 = vpow.pop %v431
      %v433 = vadd.f32 %v432, 1.0
      %v434 = vrcp.pop %v433
      %v435 = vmul.f32 1.0, %v434
      %v436 = vmul.f32 %v266, %v435
      %v437 = vpack.c.bf16 %v436, %v436
      %v438 = vlaneseq
      %v439 = vshrl.u32 %v438, 7
      %v440 = vsub.s32 2, %v439
      %v441 = vrot.slane %v269, %v440
      %v450 = vunpack.c.l.b16 %v287
      %v451 = vunpack.c.l.b16 %v288
      %v452 = vunpack.c.l.b16 %v289
      %v453 = vunpack.c.l.b16 %v290
      %v454 = vunpack.c.l.b16 %v291
      %v455 = vunpack.c.l.b16 %v292
      %v456 = vunpack.c.l.b16 %v293
      %v457 = vunpack.c.l.b16 %v294
      %v458 = vpack.c.b16 %v451, %v450
      %v459 = vpack.c.b16 %v453, %v452
      %v460 = vpack.c.b16 %v455, %v454
      %v461 = vpack.c.b16 %v457, %v456
      %v467 = vsel %vm386, %v437, 0
      %469 = vmatprep.subr.bf16.mxu0 0
      %470 = vmatpush1.bf16.msra.mxu0 %v458
      %471 = vmatprep.subr.bf16.mxu0 0
      %472 = vmatpush1.bf16.msra.mxu0 %v459
      %473 = vmatprep.subr.bf16.mxu0 0
      %474 = vmatpush1.bf16.msra.mxu0 %v460
      %475 = vmatprep.subr.bf16.mxu0 0
      %476 = vmatpush1.bf16.msra.mxu0 %v461
      %477 = vmatprep.subr.bf16.mxu0 0
      %478 = vmatpush1.bf16.msra.mxu0 0
      %479 = vmatprep.subr.bf16.mxu0 0
      %480 = vmatpush1.bf16.msra.mxu0 0
      %481 = vmatprep.subr.bf16.mxu0 0
      %482 = vmatpush1.bf16.msra.mxu0 0
      %483 = vmatprep.subr.bf16.mxu0 0
      %484 = vmatpush1.bf16.msra.mxu0 0
      %485 = vmatprep.subr.bf16.mxu0 0
      %486 = vmatpush1.bf16.msra.mxu0 0
      %487 = vmatprep.subr.bf16.mxu0 0
      %488 = vmatpush1.bf16.msra.mxu0 0
      %489 = vmatprep.subr.bf16.mxu0 0
      %490 = vmatpush1.bf16.msra.mxu0 0
      %491 = vmatprep.subr.bf16.mxu0 0
      %492 = vmatpush1.bf16.msra.mxu0 0
      %493 = vmatprep.subr.bf16.mxu0 0
      %494 = vmatpush1.bf16.msra.mxu0 0
      %495 = vmatprep.subr.bf16.mxu0 0
      %496 = vmatpush1.bf16.msra.mxu0 0
      %497 = vmatprep.subr.bf16.mxu0 0
      %498 = vmatpush1.bf16.msra.mxu0 0
      %499 = vmatprep.subr.bf16.mxu0 0
      %500 = vmatpush1.bf16.msra.mxu0 0
      %501 = vmatprep.mubr.bf16.mxu0 0
      %502 = vmatmul.mubr.bf16.gmra.mrb[0].mxu0 %v467
      %v503 = vpop.f32.mrb[0].mxu0
      %v504 = vadd.f32 %v441, %v503
      %v505 = vpop.f32.mrb[0].mxu0
      %v506 = vpop.f32.mrb[0].mxu0
      %v507 = vpop.f32.mrb[0].mxu0
      %508 = vdwg.mxu0
      %v509 = vsel %vm386, %v504, 0.0
      %510 = vadd.xlane.f32.xlu0 %v509
      %v511 = vpop.xlane.xlu0 %510
      %v512 = vrcp.pop 64.0
      %v513 = vmul.f32 %v511, %v512
      %v514 = vsub.f32 %v504, %v513
      %v515 = vmul.f32 %v514, %v514
      %v516 = vsel %vm386, %v515, 0.0
      %517 = vadd.xlane.f32.xlu0 %v516
      %v518 = vpop.xlane.xlu0 %517
      %v519 = vmul.f32 %v518, %v512
      %v520 = vadd.f32 %v519, 1e-05
      %v521 = vrsqrt.pop %v520
      %v522 = vmul.f32 %v514, %v521
      %v523 = vlaneseq
      %v524 = vshrl.u32 %v523, 7
      %v525 = vsub.s32 3, %v524
      %v526 = vrot.slane %v269, %v525
      %v527 = vmul.f32 %v522, %v526
      %v528 = vlaneseq
      %v529 = vshrl.u32 %v528, 7
      %v530 = vsub.s32 4, %v529
      %v531 = vrot.slane %v269, %v530
      %v532 = vadd.f32 %v527, %v531
      %v533 = vmax.f32 %v532, 0.0
      %v534 = vadd.f32 %v533, %v436
      %v535 = vpack.c.bf16 %v534, %v534
      %v536 = vlaneseq
      %v537 = vshrl.u32 %v536, 7
      %v538 = vsub.s32 5, %v537
      %v539 = vrot.slane %v269, %v538
      %v548 = vunpack.c.l.b16 %v271
      %v549 = vunpack.c.l.b16 %v272
      %v550 = vunpack.c.l.b16 %v273
      %v551 = vunpack.c.l.b16 %v274
      %v552 = vunpack.c.l.b16 %v275
      %v553 = vunpack.c.l.b16 %v276
      %v554 = vunpack.c.l.b16 %v277
      %v555 = vunpack.c.l.b16 %v278
      %v556 = vpack.c.b16 %v549, %v548
      %v557 = vpack.c.b16 %v551, %v550
      %v558 = vpack.c.b16 %v553, %v552
      %v559 = vpack.c.b16 %v555, %v554
      %v565 = vsel %vm386, %v535, 0
      %567 = vmatprep.subr.bf16.mxu0 0
      %568 = vmatpush1.bf16.msra.mxu0 %v556
      %569 = vmatprep.subr.bf16.mxu0 0
      %570 = vmatpush1.bf16.msra.mxu0 %v557
      %571 = vmatprep.subr.bf16.mxu0 0
      %572 = vmatpush1.bf16.msra.mxu0 %v558
      %573 = vmatprep.subr.bf16.mxu0 0
      %574 = vmatpush1.bf16.msra.mxu0 %v559
      %575 = vmatprep.subr.bf16.mxu0 0
      %576 = vmatpush1.bf16.msra.mxu0 0
      %577 = vmatprep.subr.bf16.mxu0 0
      %578 = vmatpush1.bf16.msra.mxu0 0
      %579 = vmatprep.subr.bf16.mxu0 0
      %580 = vmatpush1.bf16.msra.mxu0 0
      %581 = vmatprep.subr.bf16.mxu0 0
      %582 = vmatpush1.bf16.msra.mxu0 0
      %583 = vmatprep.subr.bf16.mxu0 0
      %584 = vmatpush1.bf16.msra.mxu0 0
      %585 = vmatprep.subr.bf16.mxu0 0
      %586 = vmatpush1.bf16.msra.mxu0 0
      %587 = vmatprep.subr.bf16.mxu0 0
      %588 = vmatpush1.bf16.msra.mxu0 0
      %589 = vmatprep.subr.bf16.mxu0 0
      %590 = vmatpush1.bf16.msra.mxu0 0
      %591 = vmatprep.subr.bf16.mxu0 0
      %592 = vmatpush1.bf16.msra.mxu0 0
      %593 = vmatprep.subr.bf16.mxu0 0
      %594 = vmatpush1.bf16.msra.mxu0 0
      %595 = vmatprep.subr.bf16.mxu0 0
      %596 = vmatpush1.bf16.msra.mxu0 0
      %597 = vmatprep.subr.bf16.mxu0 0
      %598 = vmatpush1.bf16.msra.mxu0 0
      %599 = vmatprep.mubr.bf16.mxu0 0
      %600 = vmatmul.mubr.bf16.gmra.mrb[0].mxu0 %v565
      %v601 = vpop.f32.mrb[0].mxu0
      %v602 = vadd.f32 %v539, %v601
      %v603 = vpop.f32.mrb[0].mxu0
      %v604 = vpop.f32.mrb[0].mxu0
      %v605 = vpop.f32.mrb[0].mxu0
      %606 = vdwg.mxu0
      %v607 = vlaneseq
      %v608 = vshrl.u32 %v607, 7
      %v609 = vsub.s32 4, %v608
      %v610 = vrot.slane %v267, %v609
      %v611 = vmul.f32 %v314, %v610
      %v612 = vlaneseq
      %v613 = vshrl.u32 %v612, 7
      %v614 = vsub.s32 5, %v613
      %v615 = vrot.slane %v267, %v614
      %v616 = vmul.f32 %v323, %v615
      %v617 = vadd.f32 %v611, %v616
      %v618 = vlaneseq
      %v619 = vshrl.u32 %v618, 7
      %v620 = vsub.s32 6, %v619
      %v621 = vrot.slane %v267, %v620
      %v622 = vmul.f32 %v333, %v621
      %v623 = vadd.f32 %v617, %v622
      %v624 = vlaneseq
      %v625 = vshrl.u32 %v624, 7
      %v626 = vsub.s32 7, %v625
      %v627 = vrot.slane %v267, %v626
      %v628 = vmul.f32 %v343, %v627
      %v629 = vadd.f32 %v623, %v628
      %631 = vset.pattern.permute.xlu0 0
      %632 = vperm.xlu0 %631, %v602
      %v633 = vpop.permute.xlu0 %632
      %v635 = vlaneseq
      %v636 = vshrl.u32 %v635, 7
      %v637 = vsub.s32 0, %v636
      %v638 = vrot.slane %v268, %v637
      %v639 = vmul.f32 %v633, %v638
      %640 = vset.pattern.permute.xlu0 1
      %641 = vperm.xlu0 %640, %v602
      %v642 = vpop.permute.xlu0 %641
      %v644 = vlaneseq
      %v645 = vshrl.u32 %v644, 7
      %v646 = vsub.s32 1, %v645
      %v647 = vrot.slane %v268, %v646
      %v648 = vmul.f32 %v642, %v647
      %v649 = vadd.f32 %v639, %v648
      %v650 = vadd.f32 %v629, %v649
      %v651 = vlaneseq
      %v652 = vshrl.u32 %v651, 7
      %v653 = vsub.s32 6, %v652
      %v654 = vrot.slane %v269, %v653
      %v655 = vadd.f32 %v650, %v654
      %v656 = vmax.f32 %v655, 0.0
      %v657 = vpack.c.bf16 %v656, %v656
      %v658 = vlaneseq
      %v659 = vshrl.u32 %v658, 7
      %v660 = vsub.s32 7, %v659
      %v661 = vrot.slane %v269, %v660
      %v670 = vunpack.c.l.b16 %v295
      %v671 = vunpack.c.l.b16 %v296
      %v672 = vunpack.c.l.b16 %v297
      %v673 = vunpack.c.l.b16 %v298
      %v674 = vunpack.c.l.b16 %v299
      %v675 = vunpack.c.l.b16 %v300
      %v676 = vunpack.c.l.b16 %v301
      %v677 = vunpack.c.l.b16 %v302
      %v678 = vpack.c.b16 %v671, %v670
      %v679 = vpack.c.b16 %v673, %v672
      %v680 = vpack.c.b16 %v675, %v674
      %v681 = vpack.c.b16 %v677, %v676
      %v687 = vsel %vm386, %v657, 0
      %689 = vmatprep.subr.bf16.mxu0 0
      %690 = vmatpush1.bf16.msra.mxu0 %v678
      %691 = vmatprep.subr.bf16.mxu0 0
      %692 = vmatpush1.bf16.msra.mxu0 %v679
      %693 = vmatprep.subr.bf16.mxu0 0
      %694 = vmatpush1.bf16.msra.mxu0 %v680
      %695 = vmatprep.subr.bf16.mxu0 0
      %696 = vmatpush1.bf16.msra.mxu0 %v681
      %697 = vmatprep.subr.bf16.mxu0 0
      %698 = vmatpush1.bf16.msra.mxu0 0
      %699 = vmatprep.subr.bf16.mxu0 0
      %700 = vmatpush1.bf16.msra.mxu0 0
      %701 = vmatprep.subr.bf16.mxu0 0
      %702 = vmatpush1.bf16.msra.mxu0 0
      %703 = vmatprep.subr.bf16.mxu0 0
      %704 = vmatpush1.bf16.msra.mxu0 0
      %705 = vmatprep.subr.bf16.mxu0 0
      %706 = vmatpush1.bf16.msra.mxu0 0
      %707 = vmatprep.subr.bf16.mxu0 0
      %708 = vmatpush1.bf16.msra.mxu0 0
      %709 = vmatprep.subr.bf16.mxu0 0
      %710 = vmatpush1.bf16.msra.mxu0 0
      %711 = vmatprep.subr.bf16.mxu0 0
      %712 = vmatpush1.bf16.msra.mxu0 0
      %713 = vmatprep.subr.bf16.mxu0 0
      %714 = vmatpush1.bf16.msra.mxu0 0
      %715 = vmatprep.subr.bf16.mxu0 0
      %716 = vmatpush1.bf16.msra.mxu0 0
      %717 = vmatprep.subr.bf16.mxu0 0
      %718 = vmatpush1.bf16.msra.mxu0 0
      %719 = vmatprep.subr.bf16.mxu0 0
      %720 = vmatpush1.bf16.msra.mxu0 0
      %721 = vmatprep.mubr.bf16.mxu0 0
      %722 = vmatmul.mubr.bf16.gmra.mrb[0].mxu0 %v687
      %v723 = vpop.f32.mrb[0].mxu0
      %v724 = vadd.f32 %v661, %v723
      %v725 = vpop.f32.mrb[0].mxu0
      %v726 = vpop.f32.mrb[0].mxu0
      %v727 = vpop.f32.mrb[0].mxu0
      %728 = vdwg.mxu0
      %v729 = vxor.u32 %v724, 2147483648
      %v730 = vmul.f32 %v729, 1.442695
      %v731 = vpow.pop %v730
      %v732 = vadd.f32 %v731, 1.0
      %v733 = vrcp.pop %v732
      %v734 = vmul.f32 1.0, %v733
      %v735 = vmul.f32 %v266, %v734
      %v736 = vpack.c.bf16 %v735, %v735
      %v737 = vlaneseq
      %v738 = vshrl.u32 %v737, 7
      %v739 = vsub.s32 0, %v738
      %v740 = vrot.slane %v270, %v739
      %v749 = vunpack.c.l.b16 %v303
      %v750 = vunpack.c.l.b16 %v304
      %v751 = vunpack.c.l.b16 %v305
      %v752 = vunpack.c.l.b16 %v306
      %v753 = vunpack.c.l.b16 %v307
      %v754 = vunpack.c.l.b16 %v308
      %v755 = vunpack.c.l.b16 %v309
      %v756 = vunpack.c.l.b16 %v310
      %v757 = vpack.c.b16 %v750, %v749
      %v758 = vpack.c.b16 %v752, %v751
      %v759 = vpack.c.b16 %v754, %v753
      %v760 = vpack.c.b16 %v756, %v755
      %v766 = vsel %vm386, %v736, 0
      %768 = vmatprep.subr.bf16.mxu0 0
      %769 = vmatpush1.bf16.msra.mxu0 %v757
      %770 = vmatprep.subr.bf16.mxu0 0
      %771 = vmatpush1.bf16.msra.mxu0 %v758
      %772 = vmatprep.subr.bf16.mxu0 0
      %773 = vmatpush1.bf16.msra.mxu0 %v759
      %774 = vmatprep.subr.bf16.mxu0 0
      %775 = vmatpush1.bf16.msra.mxu0 %v760
      %776 = vmatprep.subr.bf16.mxu0 0
      %777 = vmatpush1.bf16.msra.mxu0 0
      %778 = vmatprep.subr.bf16.mxu0 0
      %779 = vmatpush1.bf16.msra.mxu0 0
      %780 = vmatprep.subr.bf16.mxu0 0
      %781 = vmatpush1.bf16.msra.mxu0 0
      %782 = vmatprep.subr.bf16.mxu0 0
      %783 = vmatpush1.bf16.msra.mxu0 0
      %784 = vmatprep.subr.bf16.mxu0 0
      %785 = vmatpush1.bf16.msra.mxu0 0
      %786 = vmatprep.subr.bf16.mxu0 0
      %787 = vmatpush1.bf16.msra.mxu0 0
      %788 = vmatprep.subr.bf16.mxu0 0
      %789 = vmatpush1.bf16.msra.mxu0 0
      %790 = vmatprep.subr.bf16.mxu0 0
      %791 = vmatpush1.bf16.msra.mxu0 0
      %792 = vmatprep.subr.bf16.mxu0 0
      %793 = vmatpush1.bf16.msra.mxu0 0
      %794 = vmatprep.subr.bf16.mxu0 0
      %795 = vmatpush1.bf16.msra.mxu0 0
      %796 = vmatprep.subr.bf16.mxu0 0
      %797 = vmatpush1.bf16.msra.mxu0 0
      %798 = vmatprep.subr.bf16.mxu0 0
      %799 = vmatpush1.bf16.msra.mxu0 0
      %800 = vmatprep.mubr.bf16.mxu0 0
      %801 = vmatmul.mubr.bf16.gmra.mrb[0].mxu0 %v766
      %v802 = vpop.f32.mrb[0].mxu0
      %v803 = vadd.f32 %v740, %v802
      %v804 = vpop.f32.mrb[0].mxu0
      %v805 = vpop.f32.mrb[0].mxu0
      %v806 = vpop.f32.mrb[0].mxu0
      %807 = vdwg.mxu0
      %v808 = vsel %vm386, %v803, 0.0
      %809 = vadd.xlane.f32.xlu0 %v808
      %v810 = vpop.xlane.xlu0 %809
      %v811 = vmul.f32 %v810, %v512
      %v812 = vsub.f32 %v803, %v811
      %v813 = vmul.f32 %v812, %v812
      %v814 = vsel %vm386, %v813, 0.0
      %815 = vadd.xlane.f32.xlu0 %v814
      %v816 = vpop.xlane.xlu0 %815
      %v817 = vmul.f32 %v816, %v512
      %v818 = vadd.f32 %v817, 1e-05
      %v819 = vrsqrt.pop %v818
      %v820 = vmul.f32 %v812, %v819
      %v821 = vlaneseq
      %v822 = vshrl.u32 %v821, 7
      %v823 = vsub.s32 1, %v822
      %v824 = vrot.slane %v270, %v823
      %v825 = vmul.f32 %v820, %v824
      %v826 = vlaneseq
      %v827 = vshrl.u32 %v826, 7
      %v828 = vsub.s32 2, %v827
      %v829 = vrot.slane %v270, %v828
      %v830 = vadd.f32 %v825, %v829
      %v831 = vmax.f32 %v830, 0.0
      %v832 = vadd.f32 %v831, %v735
      %v833 = vpack.c.bf16 %v832, %v832
      %v834 = vlaneseq
      %v835 = vshrl.u32 %v834, 7
      %v836 = vsub.s32 3, %v835
      %v837 = vrot.slane %v270, %v836
      %838 = vrot.lane.b32.xlu0 %v556, 126
      %v839 = vpop.permute.xlu0 %838
      %840 = vrot.lane.b32.xlu0 %v557, 126
      %v841 = vpop.permute.xlu0 %840
      %842 = vrot.lane.b32.xlu0 %v558, 126
      %v843 = vpop.permute.xlu0 %842
      %844 = vrot.lane.b32.xlu0 %v559, 126
      %v845 = vpop.permute.xlu0 %844
      %v851 = vsel %vm386, %v833, 0
      %853 = vmatprep.subr.bf16.mxu0 0
      %854 = vmatpush1.bf16.msra.mxu0 %v839
      %855 = vmatprep.subr.bf16.mxu0 0
      %856 = vmatpush1.bf16.msra.mxu0 %v841
      %857 = vmatprep.subr.bf16.mxu0 0
      %858 = vmatpush1.bf16.msra.mxu0 %v843
      %859 = vmatprep.subr.bf16.mxu0 0
      %860 = vmatpush1.bf16.msra.mxu0 %v845
      %861 = vmatprep.subr.bf16.mxu0 0
      %862 = vmatpush1.bf16.msra.mxu0 0
      %863 = vmatprep.subr.bf16.mxu0 0
      %864 = vmatpush1.bf16.msra.mxu0 0
      %865 = vmatprep.subr.bf16.mxu0 0
      %866 = vmatpush1.bf16.msra.mxu0 0
      %867 = vmatprep.subr.bf16.mxu0 0
      %868 = vmatpush1.bf16.msra.mxu0 0
      %869 = vmatprep.subr.bf16.mxu0 0
      %870 = vmatpush1.bf16.msra.mxu0 0
      %871 = vmatprep.subr.bf16.mxu0 0
      %872 = vmatpush1.bf16.msra.mxu0 0
      %873 = vmatprep.subr.bf16.mxu0 0
      %874 = vmatpush1.bf16.msra.mxu0 0
      %875 = vmatprep.subr.bf16.mxu0 0
      %876 = vmatpush1.bf16.msra.mxu0 0
      %877 = vmatprep.subr.bf16.mxu0 0
      %878 = vmatpush1.bf16.msra.mxu0 0
      %879 = vmatprep.subr.bf16.mxu0 0
      %880 = vmatpush1.bf16.msra.mxu0 0
      %881 = vmatprep.subr.bf16.mxu0 0
      %882 = vmatpush1.bf16.msra.mxu0 0
      %883 = vmatprep.subr.bf16.mxu0 0
      %884 = vmatpush1.bf16.msra.mxu0 0
      %885 = vmatprep.mubr.bf16.mxu0 0
      %886 = vmatmul.mubr.bf16.gmra.mrb[0].mxu0 %v851
      %v887 = vpop.f32.mrb[0].mxu0
      %v888 = vadd.f32 %v837, %v887
      %v889 = vpop.f32.mrb[0].mxu0
      %v890 = vpop.f32.mrb[0].mxu0
      %v891 = vpop.f32.mrb[0].mxu0
      %892 = vdwg.mxu0
      %v893 = vmul.f32 %v265, %v265
      %vm894 = vcmask 23552
      %v895 = vsel %vm894, %v893, 0.0
      %896 = vadd.xlane.f32.xlu0 %v895
      %v897 = vpop.xlane.xlu0 %896
      %v898 = vmax.f32 %v897, 1e-24
      %v899 = vrsqrt.pop %v898
      %v900 = vmul.f32 %v265, %v899
      %v901 = vmul.f32 %v602, %v602
      %vm902 = vcmask 15360
      %v903 = vsel %vm902, %v901, 0.0
      %904 = vadd.xlane.f32.xlu0 %v903
      %v905 = vpop.xlane.xlu0 %904
      %v906 = vmax.f32 %v905, 1e-24
      %v907 = vrsqrt.pop %v906
      %v908 = vmul.f32 %v602, %v907
      %v909 = vxor.u32 %v888, 2147483648
      %v910 = vmul.f32 %v909, 1.442695
      %v911 = vpow.pop %v910
      %v912 = vadd.f32 %v911, 1.0
      %v913 = vrcp.pop %v912
      %v914 = vmul.f32 1.0, %v913
      %916 = vrot.lane.b32.xlu0 %v908, 3
      %v917 = vpop.permute.xlu0 %916
      %920 = vrot.lane.b32.xlu0 %v914, 5
      %v921 = vpop.permute.xlu0 %920
      %v923 = vsel %vm894, %v900, %v917
      %vm924 = vcmask 39936
      %v925 = vsel %vm924, %v923, %v921
      %vm926 = vcmask 56320
      %927 = vst.msk [vmem:[%s263] sm:$0xff] %vm926, %v925
      %p928 = scmp.lt.s32.totalorder %s17, 1
      %s929 = scalar_select %p928, %s17, 1
      %s930 = smul.addr %s929, 8
      %s931 = scalar_lea.vmem %s6, %s930
      // Predicated region
      $region45: #{tpu_custom_call.1} parent=43 // pred_check
        %p932 = pneg %p171
      $region46: #{tpu_custom_call.1} parent=43 // pred_check_branch
        %934 = sbr.rel (%p932) target = $region48
      $region47: #{tpu_custom_call.1} parent=43 // pred_region
        _
      $region48: #{tpu_custom_call.1} parent=43 // pred_fallthru
        _
    $region44: #{tpu_custom_call.1} parent=5 // pred_fallthru
      _
    %p935 = scmp.le.s32.totalorder 2, %s12
    // Predicated region
    $region49: #{tpu_custom_call.1} parent=5 // pred_check
      %p936 = pneg %p935
    $region50: #{tpu_custom_call.1} parent=5 // pred_check_branch
      %938 = sbr.rel (%p936) target = $region52
    $region51: #{tpu_custom_call.1} parent=5 // pred_region
      %s939 = ssub.s32 %s12, 2
      // Predicated region
      $region53: #{tpu_custom_call.1} parent=51 // pred_check
        %p940 = pneg %p177
      $region54: #{tpu_custom_call.1} parent=51 // pred_check_branch
        %942 = sbr.rel (%p940) target = $region56
      $region55: #{tpu_custom_call.1} parent=51 // pred_region
        %p943 = scmp.lt.s32.totalorder %s18, 1
        %s944 = scalar_select %p943, %s18, 1
        %s945 = smul.addr %s944, 8
        %s946 = scalar_lea.vmem %s6, %s945
      $region56: #{tpu_custom_call.1} parent=51 // pred_fallthru
        _
    $region52: #{tpu_custom_call.1} parent=5 // pred_fallthru
      _
  $region6: #{tpu_custom_call.1} parent=0 // loop_footer
    %s16 = sadd.s32 1, %s12
  $region7: #{tpu_custom_call.1} parent=0 // loop_footer_branch
    %11 = sbr.rel target = $region3
  $region8: #{tpu_custom_call.1} parent=0 // loop_exit
    _

</llo_original>
